<compile_context>
chip_gen: v7x
topology: tpu7x:2x2x1
jax: 0.10.0
libtpu: 0.0.40
codegen_flags: <defaults>
</compile_context>

<pallas_src>
import jax
import jax.numpy as jnp
from jax.experimental import pallas as pl
from jax.experimental.pallas import tpu as pltpu

LANE = 128


def _round_up(v, m):
    return (v + m - 1) // m * m


def _gin_layer_kernel(a_ref, h_src_ref, h_self_ref, w1_ref, b1_ref, w2_ref,
                      b2_ref, out_ref, acc_ref):
    """One GINConv(eps=0) + 2-layer MLP + ReLU for one (row-tile, col-tile) step.

    grid = (num_row_tiles, num_col_tiles); the col axis reduces over source nodes.
    """
    k = pl.program_id(1)

    @pl.when(k == 0)
    def _():
        # (1 + eps) * x_i with eps = 0 -> seed the accumulator with the self term.
        acc_ref[...] = h_self_ref[...].astype(jnp.float32)

    # sum_{j in N(i)} x_j : stream a (tm, tk) tile of the transposed, unweighted
    # adjacency and a (tk, D) tile of node features through the MXU.
    acc_ref[...] += jnp.dot(a_ref[...], h_src_ref[...],
                            preferred_element_type=jnp.float32)

    @pl.when(k == pl.num_programs(1) - 1)
    def _():
        z = acc_ref[...]
        y = jnp.dot(z, w1_ref[...], preferred_element_type=jnp.float32) + b1_ref[...]
        y = jnp.maximum(y, 0.0)                                   # MLP inner ReLU
        y = jnp.dot(y, w2_ref[...], preferred_element_type=jnp.float32) + b2_ref[...]
        y = jnp.maximum(y, 0.0)                                   # BasicGNN act (jk='cat')
        # TODO(synk): dropout(p=0.5) after each layer is eval-mode identity here.
        out_ref[...] = y.astype(out_ref.dtype)


def _gin_layer(a_t, h, w1t, b1, w2t, b2, *, tm=128, tk=128):
    """a_t: (Np, Np) transposed binary adjacency, h: (Np, Din), weights padded."""
    n = a_t.shape[0]
    din = h.shape[1]
    hp = w1t.shape[1]
    grid = (n // tm, n // tk)

    flops = 2 * n * n * din + 2 * n * din * hp + 2 * n * hp * hp
    bytes_accessed = 4 * (n * n + (grid[0] + 1) * n * din + n * hp
                          + din * hp + hp * hp + 2 * hp)

    return pl.pallas_call(
        _gin_layer_kernel,
        out_shape=jax.ShapeDtypeStruct((n, hp), jnp.float32),
        grid_spec=pltpu.PrefetchScalarGridSpec(
            num_scalar_prefetch=0,
            grid=grid,
            in_specs=[
                pl.BlockSpec((tm, tk), lambda i, k: (i, k)),    # adj^T tile (streamed)
                pl.BlockSpec((tk, din), lambda i, k: (k, 0)),   # source-node features
                pl.BlockSpec((tm, din), lambda i, k: (i, 0)),   # self-node features
                pl.BlockSpec((din, hp), lambda i, k: (0, 0)),   # W1^T (resident)
                pl.BlockSpec((1, hp), lambda i, k: (0, 0)),     # b1  (resident)
                pl.BlockSpec((hp, hp), lambda i, k: (0, 0)),    # W2^T (resident)
                pl.BlockSpec((1, hp), lambda i, k: (0, 0)),     # b2  (resident)
            ],
            out_specs=pl.BlockSpec((tm, hp), lambda i, k: (i, 0)),
            scratch_shapes=[pltpu.VMEM((tm, din), jnp.float32)],
        ),
        compiler_params=pltpu.CompilerParams(
            dimension_semantics=("parallel", "arbitrary"),
            vmem_limit_bytes=32 * 1024 * 1024,
        ),
        cost_estimate=pl.CostEstimate(
            flops=flops, transcendentals=0, bytes_accessed=bytes_accessed),
    )(a_t, h, h, w1t, b1, w2t, b2)


def node_aggregation_conv(x, adj, layer_params, *, hidden, tm=128, tk=128):
    """GIN(jk='cat') + final ReLU, eval mode (dropout = identity).

    x: (N, C_in) node features; adj: (N, N) dense adjacency — only its nonzero
    pattern defines edges (exactly like the scipy-coo -> edge_index conversion
    in the PyTorch module; GINConv ignores edge weights).
    layer_params: list of (W1^T, b1, W2^T, b2) per layer, unpadded.
    """
    n, c_in = x.shape
    n_p = _round_up(n, max(tm, tk))
    hp = _round_up(hidden, LANE)
    c_p = _round_up(c_in, LANE)

    # source -> target aggregation operator, transposed OUTSIDE the kernel.
    a_t = (adj != 0).astype(jnp.float32).T
    a_t = jnp.pad(a_t, ((0, n_p - n), (0, n_p - n)))

    h = jnp.pad(x.astype(jnp.float32), ((0, n_p - n), (0, c_p - c_in)))

    outs = []
    din = c_p
    for (w1t, b1, w2t, b2) in layer_params:
        w1t_p = jnp.zeros((din, hp), jnp.float32).at[:w1t.shape[0], :hidden].set(w1t)
        b1_p = jnp.zeros((1, hp), jnp.float32).at[:, :hidden].set(b1)
        w2t_p = jnp.zeros((hp, hp), jnp.float32).at[:hidden, :hidden].set(w2t)
        b2_p = jnp.zeros((1, hp), jnp.float32).at[:, :hidden].set(b2)
        h = _gin_layer(a_t, h, w1t_p, b1_p, w2t_p, b2_p, tm=tm, tk=tk)
        outs.append(h[:n, :hidden])    # drop node / lane padding
        din = hp

    out = jnp.concatenate(outs, axis=-1)     # jumping knowledge 'cat'
    return jnp.maximum(out, 0.0)             # final F.relu of NodeAggregationConv


def _reference(x, adj, layer_params, hidden):
    """Pure-JAX reference mirroring the PyTorch forward (eval mode)."""
    del hidden
    p = jax.lax.Precision.HIGHEST
    m_t = (adj != 0).astype(jnp.float32).T
    h = x
    outs = []
    for (w1t, b1, w2t, b2) in layer_params:
        z = h + jnp.dot(m_t, h, precision=p)
        y = jnp.maximum(jnp.dot(z, w1t, precision=p) + b1, 0.0)
        y = jnp.dot(y, w2t, precision=p) + b2
        y = jnp.maximum(y, 0.0)
        outs.append(y)
        h = y
    return jnp.maximum(jnp.concatenate(outs, axis=-1), 0.0)


if __name__ == "__main__":
    N, C_IN, HIDDEN, NUM_LAYERS = 256, 4, 32, 2

    key = jax.random.PRNGKey(0)
    kx, ka, *kw = jax.random.split(key, 2 + 4 * NUM_LAYERS)

    x = jax.random.normal(kx, (N, C_IN), dtype=jnp.float32)

    # ~10% dense weighted adjacency (weights ignored by GINConv, as in the spec)
    raw = jax.random.uniform(ka, (N, N), dtype=jnp.float32)
    adj = jnp.where(raw > 0.9, raw, 0.0)

    layer_params = []
    din = C_IN
    for l in range(NUM_LAYERS):
        k1, k2, k3, k4 = kw[4 * l: 4 * l + 4]
        w1t = jax.random.normal(k1, (din, HIDDEN), jnp.float32) * (1.0 / jnp.sqrt(din))
        b1 = jax.random.normal(k2, (1, HIDDEN), jnp.float32) * 0.1
        w2t = jax.random.normal(k3, (HIDDEN, HIDDEN), jnp.float32) * (1.0 / jnp.sqrt(HIDDEN))
        b2 = jax.random.normal(k4, (1, HIDDEN), jnp.float32) * 0.1
        layer_params.append((w1t, b1, w2t, b2))
        din = HIDDEN

    out = node_aggregation_conv(x, adj, layer_params, hidden=HIDDEN)
    out = jax.block_until_ready(out)

    ref = _reference(x, adj, layer_params, HIDDEN)
    assert out.shape == (N, HIDDEN * NUM_LAYERS)
    max_err = float(jnp.max(jnp.abs(out - ref)))
    assert jnp.allclose(out, ref, rtol=1e-2, atol=1e-2), f"mismatch vs reference: {max_err}"

    print("KERNEL_OK")
</pallas_src>

<mosaic_0001>
module attributes {stable_mosaic.version = 11 : i64} {
  func.func @_gin_layer_kernel(%arg0: i32, %arg1: i32, %arg2: memref<128x128xf32, #tpu.memory_space<vmem>>, %arg3: memref<128x128xf32, #tpu.memory_space<vmem>>, %arg4: memref<128x128xf32, #tpu.memory_space<vmem>>, %arg5: memref<128x128xf32, #tpu.memory_space<vmem>>, %arg6: memref<1x128xf32, #tpu.memory_space<vmem>>, %arg7: memref<128x128xf32, #tpu.memory_space<vmem>>, %arg8: memref<1x128xf32, #tpu.memory_space<vmem>>, %arg9: memref<128x128xf32, #tpu.memory_space<vmem>>, %arg10: memref<128x128xf32, #tpu.memory_space<vmem>>) attributes {dimension_semantics = [#tpu.dimension_semantics<parallel>, #tpu.dimension_semantics<arbitrary>], iteration_bounds = array<i64: 2, 2>, scalar_prefetch = 0 : i64, scratch_operands = 1 : i64, tpu.core_type = #tpu.core_type<tc>, window_params = [{transform_indices = @transform_0, window_bounds = array<i64: 128, 128>}, {transform_indices = @transform_1, window_bounds = array<i64: 128, 128>}, {transform_indices = @transform_2, window_bounds = array<i64: 128, 128>}, {pipeline_mode = #tpu.pipeline_mode<synchronous>, transform_indices = @transform_3, window_bounds = array<i64: 128, 128>}, {pipeline_mode = #tpu.pipeline_mode<synchronous>, transform_indices = @transform_4, window_bounds = array<i64: 1, 128>}, {pipeline_mode = #tpu.pipeline_mode<synchronous>, transform_indices = @transform_5, window_bounds = array<i64: 128, 128>}, {pipeline_mode = #tpu.pipeline_mode<synchronous>, transform_indices = @transform_6, window_bounds = array<i64: 1, 128>}, {transform_indices = @transform_7, window_bounds = array<i64: 128, 128>}]} {
    %c0_i32 = arith.constant 0 : i32
    %0 = arith.cmpi eq, %arg1, %c0_i32 : i32
    %1 = arith.extui %0 : i1 to i32
    %c0_i32_0 = arith.constant 0 : i32
    %2 = arith.cmpi ne, %1, %c0_i32_0 : i32
    scf.if %2 {
      %c0_9 = arith.constant 0 : index
      %c0_10 = arith.constant 0 : index
      %12 = vector.load %arg4[%c0_9, %c0_10] : memref<128x128xf32, #tpu.memory_space<vmem>>, vector<128x128xf32>
      %c0_11 = arith.constant 0 : index
      %c0_12 = arith.constant 0 : index
      %13 = vector.load %arg10[%c0_11, %c0_12] : memref<128x128xf32, #tpu.memory_space<vmem>>, vector<128x128xf32>
      tpu.vector_store %arg10[%c0_11, %c0_12], %12 {strides = array<i32>} : memref<128x128xf32, #tpu.memory_space<vmem>>, vector<128x128xf32>,
    } else {
    }
    %c0 = arith.constant 0 : index
    %c0_1 = arith.constant 0 : index
    %3 = vector.load %arg10[%c0, %c0_1] : memref<128x128xf32, #tpu.memory_space<vmem>>, vector<128x128xf32>
    %c0_2 = arith.constant 0 : index
    %c0_3 = arith.constant 0 : index
    %4 = vector.load %arg2[%c0_2, %c0_3] : memref<128x128xf32, #tpu.memory_space<vmem>>, vector<128x128xf32>
    %c0_4 = arith.constant 0 : index
    %c0_5 = arith.constant 0 : index
    %5 = vector.load %arg3[%c0_4, %c0_5] : memref<128x128xf32, #tpu.memory_space<vmem>>, vector<128x128xf32>
    %cst = arith.constant dense<0.000000e+00> : vector<128x128xf32>
    %6 = tpu.matmul %4, %5, %cst {dimension_numbers = #tpu.dot_dimension_numbers<[1], [0], [0], [1], [0, 0, 1, 1], [], []>} : vector<128x128xf32>, vector<128x128xf32>, vector<128x128xf32> -> vector<128x128xf32>
    %7 = arith.addf %3, %6 : vector<128x128xf32>
    %c0_6 = arith.constant 0 : index
    %c0_7 = arith.constant 0 : index
    %8 = vector.load %arg10[%c0_6, %c0_7] : memref<128x128xf32, #tpu.memory_space<vmem>>, vector<128x128xf32>
    tpu.vector_store %arg10[%c0_6, %c0_7], %7 {strides = array<i32>} : memref<128x128xf32, #tpu.memory_space<vmem>>, vector<128x128xf32>,
    %c1_i32 = arith.constant 1 : i32
    %9 = arith.cmpi eq, %arg1, %c1_i32 : i32
    %10 = arith.extui %9 : i1 to i32
    %c0_i32_8 = arith.constant 0 : i32
    %11 = arith.cmpi ne, %10, %c0_i32_8 : i32
    scf.if %11 {
      %c0_9 = arith.constant 0 : index
      %c0_10 = arith.constant 0 : index
      %12 = vector.load %arg10[%c0_9, %c0_10] : memref<128x128xf32, #tpu.memory_space<vmem>>, vector<128x128xf32>
      %c0_11 = arith.constant 0 : index
      %c0_12 = arith.constant 0 : index
      %13 = vector.load %arg5[%c0_11, %c0_12] : memref<128x128xf32, #tpu.memory_space<vmem>>, vector<128x128xf32>
      %cst_13 = arith.constant dense<0.000000e+00> : vector<128x128xf32>
      %14 = tpu.matmul %12, %13, %cst_13 {dimension_numbers = #tpu.dot_dimension_numbers<[1], [0], [0], [1], [0, 0, 1, 1], [], []>} : vector<128x128xf32>, vector<128x128xf32>, vector<128x128xf32> -> vector<128x128xf32>
      %c0_14 = arith.constant 0 : index
      %c0_15 = arith.constant 0 : index
      %15 = vector.load %arg6[%c0_14, %c0_15] : memref<1x128xf32, #tpu.memory_space<vmem>>, vector<1x128xf32>
      %16 = vector.broadcast %15 : vector<1x128xf32> to vector<128x128xf32>
      %17 = arith.addf %14, %16 : vector<128x128xf32>
      %cst_16 = arith.constant 0.000000e+00 : f32
      %18 = vector.broadcast %cst_16 : f32 to vector<128x128xf32>
      %19 = arith.maximumf %17, %18 : vector<128x128xf32>
      %c0_17 = arith.constant 0 : index
      %c0_18 = arith.constant 0 : index
      %20 = vector.load %arg7[%c0_17, %c0_18] : memref<128x128xf32, #tpu.memory_space<vmem>>, vector<128x128xf32>
      %cst_19 = arith.constant dense<0.000000e+00> : vector<128x128xf32>
      %21 = tpu.matmul %19, %20, %cst_19 {dimension_numbers = #tpu.dot_dimension_numbers<[1], [0], [0], [1], [0, 0, 1, 1], [], []>} : vector<128x128xf32>, vector<128x128xf32>, vector<128x128xf32> -> vector<128x128xf32>
      %c0_20 = arith.constant 0 : index
      %c0_21 = arith.constant 0 : index
      %22 = vector.load %arg8[%c0_20, %c0_21] : memref<1x128xf32, #tpu.memory_space<vmem>>, vector<1x128xf32>
      %23 = vector.broadcast %22 : vector<1x128xf32> to vector<128x128xf32>
      %24 = arith.addf %21, %23 : vector<128x128xf32>
      %cst_22 = arith.constant 0.000000e+00 : f32
      %25 = vector.broadcast %cst_22 : f32 to vector<128x128xf32>
      %26 = arith.maximumf %24, %25 : vector<128x128xf32>
      %c0_23 = arith.constant 0 : index
      %c0_24 = arith.constant 0 : index
      %27 = vector.load %arg9[%c0_23, %c0_24] : memref<128x128xf32, #tpu.memory_space<vmem>>, vector<128x128xf32>
      tpu.vector_store %arg9[%c0_23, %c0_24], %26 {strides = array<i32>} : memref<128x128xf32, #tpu.memory_space<vmem>>, vector<128x128xf32>,
    } else {
    }
    return
  }
  func.func @transform_0(%arg0: i32, %arg1: i32) -> (i32, i32) {
    %c0_i32 = arith.constant 0 : i32
    return %arg0, %arg1 : i32, i32
  }
  func.func @transform_1(%arg0: i32, %arg1: i32) -> (i32, i32) {
    %c0_i32 = arith.constant 0 : i32
    %c0_i32_0 = arith.constant 0 : i32
    return %arg1, %c0_i32 : i32, i32
  }
  func.func @transform_2(%arg0: i32, %arg1: i32) -> (i32, i32) {
    %c0_i32 = arith.constant 0 : i32
    %c0_i32_0 = arith.constant 0 : i32
    return %arg0, %c0_i32 : i32, i32
  }
  func.func @transform_3(%arg0: i32, %arg1: i32) -> (i32, i32) {
    %c0_i32 = arith.constant 0 : i32
    %c0_i32_0 = arith.constant 0 : i32
    %c0_i32_1 = arith.constant 0 : i32
    return %c0_i32, %c0_i32_0 : i32, i32
  }
  func.func @transform_4(%arg0: i32, %arg1: i32) -> (i32, i32) {
    %c0_i32 = arith.constant 0 : i32
    %c0_i32_0 = arith.constant 0 : i32
    %c0_i32_1 = arith.constant 0 : i32
    return %c0_i32, %c0_i32_0 : i32, i32
  }
  func.func @transform_5(%arg0: i32, %arg1: i32) -> (i32, i32) {
    %c0_i32 = arith.constant 0 : i32
    %c0_i32_0 = arith.constant 0 : i32
    %c0_i32_1 = arith.constant 0 : i32
    return %c0_i32, %c0_i32_0 : i32, i32
  }
  func.func @transform_6(%arg0: i32, %arg1: i32) -> (i32, i32) {
    %c0_i32 = arith.constant 0 : i32
    %c0_i32_0 = arith.constant 0 : i32
    %c0_i32_1 = arith.constant 0 : i32
    return %c0_i32, %c0_i32_0 : i32, i32
  }
  func.func @transform_7(%arg0: i32, %arg1: i32) -> (i32, i32) {
    %c0_i32 = arith.constant 0 : i32
    %c0_i32_0 = arith.constant 0 : i32
    return %arg0, %c0_i32 : i32, i32
  }
}

</mosaic_0001>

<llo_original>
// kernel: tpu_custom_call.1
$region0: #{tpu_custom_call.1}
  #allocation0 [shape = 'u32[]', space=smem, size = 0x4, offset = 0x4, fixed_abs, tag = 'smem constant byte address 0x4 - core index']
  #allocation1 [shape = 'u32[144,128]{1,0:T(1,128)}', space=vmem, size = 0x12000, scoped, tag = 'internal scratch']
  #allocation2 [shape = 'f32[128,128]{1,0:T(8,128)}', space=vmem, size = 0x10000, scoped, tag = 'scratch operand']
  %s0 = inlined_call_operand.hbm [shape: f32[256,256], index: 0, kind: input, shape index: {}]
  %s1 = inlined_call_operand.hbm [shape: f32[256,128], index: 1, kind: input, shape index: {}]
  %s2 = inlined_call_operand.hbm [shape: f32[256,128], index: 2, kind: input, shape index: {}]
  %s3 = inlined_call_operand.hbm [shape: f32[128,128], index: 3, kind: input, shape index: {}]
  %s4 = inlined_call_operand.vmem [shape: f32[1,128], index: 4, kind: input, shape index: {}]
  %s5 = inlined_call_operand.hbm [shape: f32[128,128], index: 5, kind: input, shape index: {}]
  %s6 = inlined_call_operand.vmem [shape: f32[1,128], index: 6, kind: input, shape index: {}]
  %s7 = inlined_call_operand.hbm [shape: f32[256,128], index: 7, kind: output, shape index: {}]
  %s8 = sld [smem:[#allocation0]]
  $region89: #{tpu_custom_call.1} parent=0
    _
  %s10 = ssub.s32 1, %s8
  %s11 = scalar_select 0, %s10, %s8
  $region1: #{tpu_custom_call.1} parent=0
    #allocation3 [shape = 'u8[131072]{0}', space=vmem, size = 0x20000, scoped, tag = 'input window, operand 0']
    #allocation4 [shape = 's32[2]{0}', space=sflag, size = 0x8, scoped, tag = 'scoped memory for tpu_custom_call.1']
    #allocation5 [shape = 's32[2]{0}', space=sflag, size = 0x8, scoped, tag = 'scoped memory for tpu_custom_call.1']
    #allocation6 [shape = 'u8[131072]{0}', space=vmem, size = 0x20000, scoped, tag = 'input window, operand 1']
    #allocation7 [shape = 's32[2]{0}', space=sflag, size = 0x8, scoped, tag = 'scoped memory for tpu_custom_call.1']
    #allocation8 [shape = 'u8[131072]{0}', space=vmem, size = 0x20000, scoped, tag = 'input window, operand 2']
    #allocation9 [shape = 'u8[65536]{0}', space=vmem, size = 0x10000, scoped, tag = 'input window, operand 3, single buffered']
    #allocation10 [shape = 's32[1]{0}', space=sflag, size = 0x4, scoped, tag = 'scoped memory for tpu_custom_call.1']
    #allocation11 [shape = 'u8[65536]{0}', space=vmem, size = 0x10000, scoped, tag = 'input window, operand 5, single buffered']
    #allocation12 [shape = 'u8[131072]{0}', space=vmem, size = 0x20000, scoped, tag = 'output window, operand 0']
    %12 = vsyncpa [#allocation4], 0
    %s13 = scalar_lea.sflag [#allocation4], 1
    %14 = vsyncpa %s13, 0
    %15 = vsyncpa [#allocation7], 0
    %s16 = scalar_lea.sflag [#allocation7], 1
    %17 = vsyncpa %s16, 0
    %18 = vsyncpa [#allocation10], 0
    %19 = vsyncpa [#allocation5], 0
    %s20 = scalar_lea.sflag [#allocation5], 1
    %21 = vsyncpa %s20, 0
    loop: start=0, step=1, limit=6
    $region2: #{tpu_custom_call.1} parent=1 // loop_pre_header
      _
    $region3: #{tpu_custom_call.1} parent=1 // loop_header
      %s23 = sphi 0, %s27
      %p24 = scmp.ge.s32.totalorder %s23, 6
      %s30 = sphi 0, %s42
      %s31 = sphi 0, %s38
      %s32 = sphi 0, %s30
      %s33 = sphi 0, %s31
      %s34 = sphi 0, %s32
      %s35 = sphi 0, %s33
      %s47 = sphi 0, %s49
      %s50 = sphi 0, %s47
      %s51 = sphi 0, %s50
      %s67 = sphi 0, %s51
      %s73 = sphi 0, %s75
      %s76 = sphi 0, %s73
      %s77 = sphi 0, %s76
      %s93 = sphi 0, %s77
      %s99 = sphi 0, %s101
      %s102 = sphi 0, %s99
      %s103 = sphi 0, %s102
      %s119 = sphi 0, %s103
      %s123 = sphi 0, %s123
      %s125 = sphi 0, %s123
      %s126 = sphi 0, %s125
      %s140 = sphi 0, %s126
      %s144 = sphi 0, %s144
      %s146 = sphi 0, %s144
      %s147 = sphi 0, %s146
      %s161 = sphi 0, %s147
      %s165 = sphi 0, %s165
      %s167 = sphi 0, %s165
      %s168 = sphi 0, %s167
      %s182 = sphi 0, %s168
      %s186 = sphi 0, %s186
      %s188 = sphi 0, %s186
      %s189 = sphi 0, %s188
      %s203 = sphi 0, %s189
      %s209 = sphi 0, %s211
      %s212 = sphi 0, %s209
      %s213 = sphi 0, %s212
      %s229 = sphi 0, %s213
    $region4: #{tpu_custom_call.1} parent=1 // loop_header_branch
      %26 = sbr.rel (%p24) target = $region8
    $region5: #{tpu_custom_call.1} parent=1 // loop_body
      %s28 = ssub.s32 %s23, 1
      %s29 = ssub.s32 %s23, 2
      %s36 = sadd.s32 1, %s31
      %p37 = scmp.ge.s32.totalorder %s36, 2
      %s38 = scalar_select %p37, 0, %s36
      %s39 = sadd.s32 1, %s30
      %s40 = scalar_select %p37, %s39, %s30
      %p41 = scmp.ge.s32.totalorder %s40, 2
      %s42 = scalar_select %p41, 0, %s40
      %s43 = ssub.s32 %s30, %s42
      %s44 = ssub.s32 %s31, %s38
      %s45 = sor.u32 %s43, %s44
      %p46 = scmp.eq.s32.totalorder %s45, 0
      %s48 = sadd.s32 %s47, 1
      %s49 = scalar_select %p46, %s47, %s48
      %p52 = pneg %p46
      %p53 = scmp.eq.s32.totalorder %s23, 3
      %p54 = por %p52, %p53
      %p55 = scmp.ne.s32.totalorder %s47, %s50
      %p56 = scmp.eq.s32.totalorder %s23, 0
      %p57 = por %p55, %p56
      %p58 = scmp.ne.s32.totalorder %s47, %s50
      %p59 = scmp.eq.s32.totalorder %s28, 3
      %p60 = por %p58, %p59
      %p61 = scmp.ne.s32.totalorder %s50, %s51
      %p62 = scmp.eq.s32.totalorder %s28, 0
      %p63 = por %p61, %p62
      %p64 = scmp.ne.s32.totalorder %s50, %s51
      %p65 = scmp.eq.s32.totalorder %s29, 3
      %p66 = por %p64, %p65
      %p68 = scmp.ne.s32.totalorder %s51, %s67
      %p69 = scmp.eq.s32.totalorder %s29, 0
      %p70 = por %p68, %p69
      %s71 = ssub.s32 %s31, %s38
      %p72 = scmp.eq.s32.totalorder %s71, 0
      %s74 = sadd.s32 %s73, 1
      %s75 = scalar_select %p72, %s73, %s74
      %p78 = pneg %p72
      %p79 = scmp.eq.s32.totalorder %s23, 3
      %p80 = por %p78, %p79
      %p81 = scmp.ne.s32.totalorder %s73, %s76
      %p82 = scmp.eq.s32.totalorder %s23, 0
      %p83 = por %p81, %p82
      %p84 = scmp.ne.s32.totalorder %s73, %s76
      %p85 = scmp.eq.s32.totalorder %s28, 3
      %p86 = por %p84, %p85
      %p87 = scmp.ne.s32.totalorder %s76, %s77
      %p88 = scmp.eq.s32.totalorder %s28, 0
      %p89 = por %p87, %p88
      %p90 = scmp.ne.s32.totalorder %s76, %s77
      %p91 = scmp.eq.s32.totalorder %s29, 3
      %p92 = por %p90, %p91
      %p94 = scmp.ne.s32.totalorder %s77, %s93
      %p95 = scmp.eq.s32.totalorder %s29, 0
      %p96 = por %p94, %p95
      %s97 = ssub.s32 %s30, %s42
      %p98 = scmp.eq.s32.totalorder %s97, 0
      %s100 = sadd.s32 %s99, 1
      %s101 = scalar_select %p98, %s99, %s100
      %p104 = pneg %p98
      %p105 = scmp.eq.s32.totalorder %s23, 3
      %p106 = por %p104, %p105
      %p107 = scmp.ne.s32.totalorder %s99, %s102
      %p108 = scmp.eq.s32.totalorder %s23, 0
      %p109 = por %p107, %p108
      %p110 = scmp.ne.s32.totalorder %s99, %s102
      %p111 = scmp.eq.s32.totalorder %s28, 3
      %p112 = por %p110, %p111
      %p113 = scmp.ne.s32.totalorder %s102, %s103
      %p114 = scmp.eq.s32.totalorder %s28, 0
      %p115 = por %p113, %p114
      %p116 = scmp.ne.s32.totalorder %s102, %s103
      %p117 = scmp.eq.s32.totalorder %s29, 3
      %p118 = por %p116, %p117
      %p120 = scmp.ne.s32.totalorder %s103, %s119
      %p121 = scmp.eq.s32.totalorder %s29, 0
      %p122 = por %p120, %p121
      %s124 = sadd.s32 %s123, 1
      %p127 = scmp.eq.s32.totalorder %s23, 3
      %p128 = scmp.ne.s32.totalorder %s123, %s125
      %p129 = scmp.eq.s32.totalorder %s23, 0
      %p130 = por %p128, %p129
      %p131 = scmp.ne.s32.totalorder %s123, %s125
      %p132 = scmp.eq.s32.totalorder %s28, 3
      %p133 = por %p131, %p132
      %p134 = scmp.ne.s32.totalorder %s125, %s126
      %p135 = scmp.eq.s32.totalorder %s28, 0
      %p136 = por %p134, %p135
      %p137 = scmp.ne.s32.totalorder %s125, %s126
      %p138 = scmp.eq.s32.totalorder %s29, 3
      %p139 = por %p137, %p138
      %p141 = scmp.ne.s32.totalorder %s126, %s140
      %p142 = scmp.eq.s32.totalorder %s29, 0
      %p143 = por %p141, %p142
      %s145 = sadd.s32 %s144, 1
      %p148 = scmp.eq.s32.totalorder %s23, 3
      %p149 = scmp.ne.s32.totalorder %s144, %s146
      %p150 = scmp.eq.s32.totalorder %s23, 0
      %p151 = por %p149, %p150
      %p152 = scmp.ne.s32.totalorder %s144, %s146
      %p153 = scmp.eq.s32.totalorder %s28, 3
      %p154 = por %p152, %p153
      %p155 = scmp.ne.s32.totalorder %s146, %s147
      %p156 = scmp.eq.s32.totalorder %s28, 0
      %p157 = por %p155, %p156
      %p158 = scmp.ne.s32.totalorder %s146, %s147
      %p159 = scmp.eq.s32.totalorder %s29, 3
      %p160 = por %p158, %p159
      %p162 = scmp.ne.s32.totalorder %s147, %s161
      %p163 = scmp.eq.s32.totalorder %s29, 0
      %p164 = por %p162, %p163
      %s166 = sadd.s32 %s165, 1
      %p169 = scmp.eq.s32.totalorder %s23, 3
      %p170 = scmp.ne.s32.totalorder %s165, %s167
      %p171 = scmp.eq.s32.totalorder %s23, 0
      %p172 = por %p170, %p171
      %p173 = scmp.ne.s32.totalorder %s165, %s167
      %p174 = scmp.eq.s32.totalorder %s28, 3
      %p175 = por %p173, %p174
      %p176 = scmp.ne.s32.totalorder %s167, %s168
      %p177 = scmp.eq.s32.totalorder %s28, 0
      %p178 = por %p176, %p177
      %p179 = scmp.ne.s32.totalorder %s167, %s168
      %p180 = scmp.eq.s32.totalorder %s29, 3
      %p181 = por %p179, %p180
      %p183 = scmp.ne.s32.totalorder %s168, %s182
      %p184 = scmp.eq.s32.totalorder %s29, 0
      %p185 = por %p183, %p184
      %s187 = sadd.s32 %s186, 1
      %p190 = scmp.eq.s32.totalorder %s23, 3
      %p191 = scmp.ne.s32.totalorder %s186, %s188
      %p192 = scmp.eq.s32.totalorder %s23, 0
      %p193 = por %p191, %p192
      %p194 = scmp.ne.s32.totalorder %s186, %s188
      %p195 = scmp.eq.s32.totalorder %s28, 3
      %p196 = por %p194, %p195
      %p197 = scmp.ne.s32.totalorder %s188, %s189
      %p198 = scmp.eq.s32.totalorder %s28, 0
      %p199 = por %p197, %p198
      %p200 = scmp.ne.s32.totalorder %s188, %s189
      %p201 = scmp.eq.s32.totalorder %s29, 3
      %p202 = por %p200, %p201
      %p204 = scmp.ne.s32.totalorder %s189, %s203
      %p205 = scmp.eq.s32.totalorder %s29, 0
      %p206 = por %p204, %p205
      %s207 = ssub.s32 %s30, %s42
      %p208 = scmp.eq.s32.totalorder %s207, 0
      %s210 = sadd.s32 %s209, 1
      %s211 = scalar_select %p208, %s209, %s210
      %p214 = pneg %p208
      %p215 = scmp.eq.s32.totalorder %s23, 3
      %p216 = por %p214, %p215
      %p217 = scmp.ne.s32.totalorder %s209, %s212
      %p218 = scmp.eq.s32.totalorder %s23, 0
      %p219 = por %p217, %p218
      %p220 = scmp.ne.s32.totalorder %s209, %s212
      %p221 = scmp.eq.s32.totalorder %s28, 3
      %p222 = por %p220, %p221
      %p223 = scmp.ne.s32.totalorder %s212, %s213
      %p224 = scmp.eq.s32.totalorder %s28, 0
      %p225 = por %p223, %p224
      %p226 = scmp.ne.s32.totalorder %s212, %s213
      %p227 = scmp.eq.s32.totalorder %s29, 3
      %p228 = por %p226, %p227
      %p230 = scmp.ne.s32.totalorder %s213, %s229
      %p231 = scmp.eq.s32.totalorder %s29, 0
      %p232 = por %p230, %p231
      %p233 = scmp.le.s32.totalorder 1, %s23
      %p234 = scmp.lt.s32.totalorder %s23, 5
      %p235 = pnand %p233, %p234
      %p236 = pneg %p235
      // Predicated region
      $region9: #{tpu_custom_call.1} parent=5 // pred_check
        _
      $region10: #{tpu_custom_call.1} parent=5 // pred_check_branch
        %238 = sbr.rel (%p235) target = $region12
      $region11: #{tpu_custom_call.1} parent=5 // pred_region
        %s239 = ssub.s32 %s23, 1
        // Predicated region
        $region13: #{tpu_custom_call.1} parent=11 // pred_check
          %p240 = pneg %p136
        $region14: #{tpu_custom_call.1} parent=11 // pred_check_branch
          %242 = sbr.rel (%p240) target = $region16
        $region15: #{tpu_custom_call.1} parent=11 // pred_region
          %s244 = ssub.s32 2048, 2048
          %245 = vsyncadd [#allocation10], %s244
          %s246 = sshll.u32 [#allocation9], 4
          %s247 = int_to_ptr.vmem [resolvable:$true] %s246
          %252 = dma.hbm_to_vmem [thread:$0]  %s3, 2048, %s247, [#allocation10], 128, 128, 8
        $region16: #{tpu_custom_call.1} parent=11 // pred_fallthru
          _
        // Predicated region
        $region17: #{tpu_custom_call.1} parent=11 // pred_check
          %p253 = pneg %p157
        $region18: #{tpu_custom_call.1} parent=11 // pred_check_branch
          %255 = sbr.rel (%p253) target = $region20
        $region19: #{tpu_custom_call.1} parent=11 // pred_region
          _
        $region20: #{tpu_custom_call.1} parent=11 // pred_fallthru
          _
        // Predicated region
        $region21: #{tpu_custom_call.1} parent=11 // pred_check
          %p256 = pneg %p178
        $region22: #{tpu_custom_call.1} parent=11 // pred_check_branch
          %258 = sbr.rel (%p256) target = $region24
        $region23: #{tpu_custom_call.1} parent=11 // pred_region
          %s260 = ssub.s32 2048, 2048
          %261 = vsyncadd [#allocation10], %s260
          %s262 = sshll.u32 [#allocation11], 4
          %s263 = int_to_ptr.vmem [resolvable:$true] %s262
          %268 = dma.hbm_to_vmem [thread:$0]  %s5, 2048, %s263, [#allocation10], 128, 128, 8
        $region24: #{tpu_custom_call.1} parent=11 // pred_fallthru
          _
        // Predicated region
        $region25: #{tpu_custom_call.1} parent=11 // pred_check
          %p269 = pneg %p199
        $region26: #{tpu_custom_call.1} parent=11 // pred_check_branch
          %271 = sbr.rel (%p269) target = $region28
        $region27: #{tpu_custom_call.1} parent=11 // pred_region
          _
        $region28: #{tpu_custom_call.1} parent=11 // pred_fallthru
          _
      $region12: #{tpu_custom_call.1} parent=5 // pred_fallthru
        _
      %p272 = scmp.lt.s32.totalorder %s23, 4
      // Predicated region
      $region29: #{tpu_custom_call.1} parent=5 // pred_check
        %p273 = pneg %p272
      $region30: #{tpu_custom_call.1} parent=5 // pred_check_branch
        %275 = sbr.rel (%p273) target = $region32
      $region31: #{tpu_custom_call.1} parent=5 // pred_region
        // Predicated region
        $region33: #{tpu_custom_call.1} parent=31 // pred_check
          %p276 = pneg %p57
        $region34: #{tpu_custom_call.1} parent=31 // pred_check_branch
          %278 = sbr.rel (%p276) target = $region36
        $region35: #{tpu_custom_call.1} parent=31 // pred_region
          %s279 = sand.u32 %s47, 1
          %s280 = scalar_lea.sflag [#allocation4], %s279
          %s281 = sand.u32 %s47, 1
          %s282 = smul.addr %s281, 128
          %s283 = scalar_lea.vmem [#allocation3], %s282
          %s284 = smul.u32 16, %s30
          %s286 = ssub.s32 2048, 2048
          %287 = vsyncadd %s280, %s286
          %s288 = smul.addr %s284, 2
          %s289 = sadd.s32 %s31, %s288
          %s290 = smul.addr %s289, 128
          %s291 = scalar_lea.hbm %s0, %s290
          %s292 = sshll.u32 %s283, 4
          %s293 = int_to_ptr.vmem [resolvable:$true] %s292
          %298 = dma.hbm_to_vmem [thread:$0]  %s291, 2048, %s293, %s280, 256, 128, 8
        $region36: #{tpu_custom_call.1} parent=31 // pred_fallthru
          _
        // Predicated region
        $region37: #{tpu_custom_call.1} parent=31 // pred_check
          %p299 = pneg %p83
        $region38: #{tpu_custom_call.1} parent=31 // pred_check_branch
          %301 = sbr.rel (%p299) target = $region40
        $region39: #{tpu_custom_call.1} parent=31 // pred_region
          %s302 = sand.u32 %s23, 1
          %s303 = scalar_lea.sflag [#allocation7], %s302
          %s304 = sand.u32 %s73, 1
          %s305 = smul.addr %s304, 128
          %s306 = scalar_lea.vmem [#allocation6], %s305
          %s307 = smul.u32 16, %s31
          %s309 = ssub.s32 2048, 2048
          %310 = vsyncadd %s303, %s309
          %s311 = smul.addr %s307, 128
          %s312 = scalar_lea.hbm %s1, %s311
          %s313 = sshll.u32 %s306, 4
          %s314 = int_to_ptr.vmem [resolvable:$true] %s313
          %319 = dma.hbm_to_vmem [thread:$0]  %s312, 2048, %s314, %s303, 128, 128, 8
        $region40: #{tpu_custom_call.1} parent=31 // pred_fallthru
          _
        // Predicated region
        $region41: #{tpu_custom_call.1} parent=31 // pred_check
          %p320 = pneg %p109
        $region42: #{tpu_custom_call.1} parent=31 // pred_check_branch
          %322 = sbr.rel (%p320) target = $region44
        $region43: #{tpu_custom_call.1} parent=31 // pred_region
          %s323 = sand.u32 %s23, 1
          %s324 = scalar_lea.sflag [#allocation7], %s323
          %s325 = sand.u32 %s99, 1
          %s326 = smul.addr %s325, 128
          %s327 = scalar_lea.vmem [#allocation8], %s326
          %s328 = smul.u32 16, %s30
          %s330 = ssub.s32 2048, 2048
          %331 = vsyncadd %s324, %s330
          %s332 = smul.addr %s328, 128
          %s333 = scalar_lea.hbm %s2, %s332
          %s334 = sshll.u32 %s327, 4
          %s335 = int_to_ptr.vmem [resolvable:$true] %s334
          %340 = dma.hbm_to_vmem [thread:$0]  %s333, 2048, %s335, %s324, 128, 128, 8
        $region44: #{tpu_custom_call.1} parent=31 // pred_fallthru
          _
      $region32: #{tpu_custom_call.1} parent=5 // pred_fallthru
        _
      %p341 = scmp.le.s32.totalorder 1, %s23
      %p342 = scmp.lt.s32.totalorder %s23, 5
      %p343 = pnand %p341, %p342
      %p344 = pneg %p343
      // Predicated region
      $region45: #{tpu_custom_call.1} parent=5 // pred_check
        _
      $region46: #{tpu_custom_call.1} parent=5 // pred_check_branch
        %346 = sbr.rel (%p343) target = $region48
      $region47: #{tpu_custom_call.1} parent=5 // pred_region
        %s347 = ssub.s32 %s23, 1
        %s348 = sand.u32 %s50, 1
        %s349 = scalar_lea.sflag [#allocation4], %s348
        %s350 = sand.u32 %s50, 1
        %s351 = smul.addr %s350, 128
        %s352 = scalar_lea.vmem [#allocation3], %s351
        // Predicated region
        $region49: #{tpu_custom_call.1} parent=47 // pred_check
          %p353 = pneg %p63
        $region50: #{tpu_custom_call.1} parent=47 // pred_check_branch
          %355 = sbr.rel (%p353) target = $region52
        $region51: #{tpu_custom_call.1} parent=47 // pred_region
          %356 = dma.done %s349, 2048
        $region52: #{tpu_custom_call.1} parent=47 // pred_fallthru
          _
        %s357 = sand.u32 %s28, 1
        %s358 = scalar_lea.sflag [#allocation7], %s357
        %s359 = sand.u32 %s76, 1
        %s360 = smul.addr %s359, 128
        %s361 = scalar_lea.vmem [#allocation6], %s360
        // Predicated region
        $region53: #{tpu_custom_call.1} parent=47 // pred_check
          %p362 = pneg %p89
        $region54: #{tpu_custom_call.1} parent=47 // pred_check_branch
          %364 = sbr.rel (%p362) target = $region56
        $region55: #{tpu_custom_call.1} parent=47 // pred_region
          %365 = dma.done %s358, 2048
        $region56: #{tpu_custom_call.1} parent=47 // pred_fallthru
          _
        %s366 = sand.u32 %s28, 1
        %s367 = scalar_lea.sflag [#allocation7], %s366
        %s368 = sand.u32 %s102, 1
        %s369 = smul.addr %s368, 128
        %s370 = scalar_lea.vmem [#allocation8], %s369
        // Predicated region
        $region57: #{tpu_custom_call.1} parent=47 // pred_check
          %p371 = pneg %p115
        $region58: #{tpu_custom_call.1} parent=47 // pred_check_branch
          %373 = sbr.rel (%p371) target = $region60
        $region59: #{tpu_custom_call.1} parent=47 // pred_region
          %374 = dma.done %s367, 2048
        $region60: #{tpu_custom_call.1} parent=47 // pred_fallthru
          _
        // Predicated region
        $region61: #{tpu_custom_call.1} parent=47 // pred_check
          %p375 = pneg %p136
        $region62: #{tpu_custom_call.1} parent=47 // pred_check_branch
          %377 = sbr.rel (%p375) target = $region64
        $region63: #{tpu_custom_call.1} parent=47 // pred_region
          %378 = dma.done [#allocation10], 2048
        $region64: #{tpu_custom_call.1} parent=47 // pred_fallthru
          _
        // Predicated region
        $region65: #{tpu_custom_call.1} parent=47 // pred_check
          %p379 = pneg %p178
        $region66: #{tpu_custom_call.1} parent=47 // pred_check_branch
          %381 = sbr.rel (%p379) target = $region68
        $region67: #{tpu_custom_call.1} parent=47 // pred_region
          %382 = dma.done [#allocation10], 2048
        $region68: #{tpu_custom_call.1} parent=47 // pred_fallthru
          _
        %s383 = sand.u32 %s50, 1
        %s384 = scalar_lea.sflag [#allocation4], %s383
        %s385 = sand.u32 %s50, 1
        %s386 = smul.addr %s385, 128
        %s387 = scalar_lea.vmem [#allocation3], %s386
        %p388 = pneg %p63
        %p389 = pneg %p60
        %s390 = sand.u32 %s28, 1
        %s391 = scalar_lea.sflag [#allocation7], %s390
        %s392 = sand.u32 %s76, 1
        %s393 = smul.addr %s392, 128
        %s394 = scalar_lea.vmem [#allocation6], %s393
        %p395 = pneg %p89
        %p396 = pneg %p86
        %s397 = sand.u32 %s28, 1
        %s398 = scalar_lea.sflag [#allocation7], %s397
        %s399 = sand.u32 %s102, 1
        %s400 = smul.addr %s399, 128
        %s401 = scalar_lea.vmem [#allocation8], %s400
        %p402 = pneg %p115
        %p403 = pneg %p112
        %p404 = pneg %p136
        %p405 = pneg %p133
        %p406 = pneg %p157
        %p407 = pneg %p154
        %p408 = pneg %p178
        %p409 = pneg %p175
        %p410 = pneg %p199
        %p411 = pneg %p196
        %p412 = pneg %p225
        %p413 = pneg %p222
        %s414 = sand.u32 %s212, 1
        %s415 = scalar_lea.sflag [#allocation5], %s414
        %s416 = sand.u32 %s212, 1
        %s417 = smul.addr %s416, 128
        %s418 = scalar_lea.vmem [#allocation12], %s417
        %s419 = smul.u32 16, %s32
        %s420 = smul.u32 16, %s33
        %s421 = smul.u32 16, %s32
        %s422 = smul.u32 16, %s32
        %p423 = scmp.eq.s32.totalorder %s33, 0
        // Predicated region
        $region69: #{tpu_custom_call.1} parent=47 // pred_check
          %p424 = pneg %p423
        $region70: #{tpu_custom_call.1} parent=47 // pred_check_branch
          %426 = sbr.rel (%p424) target = $region72
        $region71: #{tpu_custom_call.1} parent=47 // pred_region
          %v427 = vld [vmem:[%s370] sm:$0xff]
          %v428 = vld [vmem:[%s370 + $0x8] sm:$0xff]
          %v429 = vld [vmem:[%s370 + $0x10] sm:$0xff]
          %v430 = vld [vmem:[%s370 + $0x18] sm:$0xff]
          %v431 = vld [vmem:[%s370 + $0x20] sm:$0xff]
          %v432 = vld [vmem:[%s370 + $0x28] sm:$0xff]
          %v433 = vld [vmem:[%s370 + $0x30] sm:$0xff]
          %v434 = vld [vmem:[%s370 + $0x38] sm:$0xff]
          %v435 = vld [vmem:[%s370 + $0x40] sm:$0xff]
          %v436 = vld [vmem:[%s370 + $0x48] sm:$0xff]
          %v437 = vld [vmem:[%s370 + $0x50] sm:$0xff]
          %v438 = vld [vmem:[%s370 + $0x58] sm:$0xff]
          %v439 = vld [vmem:[%s370 + $0x60] sm:$0xff]
          %v440 = vld [vmem:[%s370 + $0x68] sm:$0xff]
          %v441 = vld [vmem:[%s370 + $0x70] sm:$0xff]
          %v442 = vld [vmem:[%s370 + $0x78] sm:$0xff]
          %443 = vst [vmem:[#allocation2] sm:$0xff] %v427
          %444 = vst [vmem:[#allocation2 + $0x8] sm:$0xff] %v428
          %445 = vst [vmem:[#allocation2 + $0x10] sm:$0xff] %v429
          %446 = vst [vmem:[#allocation2 + $0x18] sm:$0xff] %v430
          %447 = vst [vmem:[#allocation2 + $0x20] sm:$0xff] %v431
          %448 = vst [vmem:[#allocation2 + $0x28] sm:$0xff] %v432
          %449 = vst [vmem:[#allocation2 + $0x30] sm:$0xff] %v433
          %450 = vst [vmem:[#allocation2 + $0x38] sm:$0xff] %v434
          %451 = vst [vmem:[#allocation2 + $0x40] sm:$0xff] %v435
          %452 = vst [vmem:[#allocation2 + $0x48] sm:$0xff] %v436
          %453 = vst [vmem:[#allocation2 + $0x50] sm:$0xff] %v437
          %454 = vst [vmem:[#allocation2 + $0x58] sm:$0xff] %v438
          %455 = vst [vmem:[#allocation2 + $0x60] sm:$0xff] %v439
          %456 = vst [vmem:[#allocation2 + $0x68] sm:$0xff] %v440
          %457 = vst [vmem:[#allocation2 + $0x70] sm:$0xff] %v441
          %458 = vst [vmem:[#allocation2 + $0x78] sm:$0xff] %v442
        $region72: #{tpu_custom_call.1} parent=47 // pred_fallthru
          _
        %v459 = vld [vmem:[#allocation2] sm:$0xff]
        %v460 = vld [vmem:[#allocation2 + $0x8] sm:$0xff]
        %v461 = vld [vmem:[#allocation2 + $0x10] sm:$0xff]
        %v462 = vld [vmem:[#allocation2 + $0x18] sm:$0xff]
        %v463 = vld [vmem:[#allocation2 + $0x20] sm:$0xff]
        %v464 = vld [vmem:[#allocation2 + $0x28] sm:$0xff]
        %v465 = vld [vmem:[#allocation2 + $0x30] sm:$0xff]
        %v466 = vld [vmem:[#allocation2 + $0x38] sm:$0xff]
        %v467 = vld [vmem:[#allocation2 + $0x40] sm:$0xff]
        %v468 = vld [vmem:[#allocation2 + $0x48] sm:$0xff]
        %v469 = vld [vmem:[#allocation2 + $0x50] sm:$0xff]
        %v470 = vld [vmem:[#allocation2 + $0x58] sm:$0xff]
        %v471 = vld [vmem:[#allocation2 + $0x60] sm:$0xff]
        %v472 = vld [vmem:[#allocation2 + $0x68] sm:$0xff]
        %v473 = vld [vmem:[#allocation2 + $0x70] sm:$0xff]
        %v474 = vld [vmem:[#allocation2 + $0x78] sm:$0xff]
        %v475 = vld [vmem:[%s352] sm:$0xff]
        %v476 = vld [vmem:[%s352 + $0x8] sm:$0xff]
        %v477 = vld [vmem:[%s352 + $0x10] sm:$0xff]
        %v478 = vld [vmem:[%s352 + $0x18] sm:$0xff]
        %v479 = vld [vmem:[%s352 + $0x20] sm:$0xff]
        %v480 = vld [vmem:[%s352 + $0x28] sm:$0xff]
        %v481 = vld [vmem:[%s352 + $0x30] sm:$0xff]
        %v482 = vld [vmem:[%s352 + $0x38] sm:$0xff]
        %v483 = vld [vmem:[%s352 + $0x40] sm:$0xff]
        %v484 = vld [vmem:[%s352 + $0x48] sm:$0xff]
        %v485 = vld [vmem:[%s352 + $0x50] sm:$0xff]
        %v486 = vld [vmem:[%s352 + $0x58] sm:$0xff]
        %v487 = vld [vmem:[%s352 + $0x60] sm:$0xff]
        %v488 = vld [vmem:[%s352 + $0x68] sm:$0xff]
        %v489 = vld [vmem:[%s352 + $0x70] sm:$0xff]
        %v490 = vld [vmem:[%s352 + $0x78] sm:$0xff]
        %v491 = vld [vmem:[%s361] sm:$0xff]
        %v492 = vld [vmem:[%s361 + $0x8] sm:$0xff]
        %v493 = vld [vmem:[%s361 + $0x10] sm:$0xff]
        %v494 = vld [vmem:[%s361 + $0x18] sm:$0xff]
        %v495 = vld [vmem:[%s361 + $0x20] sm:$0xff]
        %v496 = vld [vmem:[%s361 + $0x28] sm:$0xff]
        %v497 = vld [vmem:[%s361 + $0x30] sm:$0xff]
        %v498 = vld [vmem:[%s361 + $0x38] sm:$0xff]
        %v499 = vld [vmem:[%s361 + $0x40] sm:$0xff]
        %v500 = vld [vmem:[%s361 + $0x48] sm:$0xff]
        %v501 = vld [vmem:[%s361 + $0x50] sm:$0xff]
        %v502 = vld [vmem:[%s361 + $0x58] sm:$0xff]
        %v503 = vld [vmem:[%s361 + $0x60] sm:$0xff]
        %v504 = vld [vmem:[%s361 + $0x68] sm:$0xff]
        %v505 = vld [vmem:[%s361 + $0x70] sm:$0xff]
        %v506 = vld [vmem:[%s361 + $0x78] sm:$0xff]
        %507 = vmatprep.subr.mxu0 0.0
        %508 = vmatpush1.msra.mxu0 %v491
        %509 = vmatprep.subr.mxu0 0.0
        %510 = vmatpush1.msra.mxu0 %v492
        %511 = vmatprep.subr.mxu0 0.0
        %512 = vmatpush1.msra.mxu0 %v493
        %513 = vmatprep.subr.mxu0 0.0
        %514 = vmatpush1.msra.mxu0 %v494
        %515 = vmatprep.subr.mxu0 0.0
        %516 = vmatpush1.msra.mxu0 %v495
        %517 = vmatprep.subr.mxu0 0.0
        %518 = vmatpush1.msra.mxu0 %v496
        %519 = vmatprep.subr.mxu0 0.0
        %520 = vmatpush1.msra.mxu0 %v497
        %521 = vmatprep.subr.mxu0 0.0
        %522 = vmatpush1.msra.mxu0 %v498
        %523 = vmatprep.subr.mxu0 0.0
        %524 = vmatpush1.msra.mxu0 %v499
        %525 = vmatprep.subr.mxu0 0.0
        %526 = vmatpush1.msra.mxu0 %v500
        %527 = vmatprep.subr.mxu0 0.0
        %528 = vmatpush1.msra.mxu0 %v501
        %529 = vmatprep.subr.mxu0 0.0
        %530 = vmatpush1.msra.mxu0 %v502
        %531 = vmatprep.subr.mxu0 0.0
        %532 = vmatpush1.msra.mxu0 %v503
        %533 = vmatprep.subr.mxu0 0.0
        %534 = vmatpush1.msra.mxu0 %v504
        %535 = vmatprep.subr.mxu0 0.0
        %536 = vmatpush1.msra.mxu0 %v505
        %537 = vmatprep.subr.mxu0 0.0
        %538 = vmatpush1.msra.mxu0 %v506
        %539 = vmatprep.subr.mxu0 0.0
        %540 = vmatpush1.msra.mxu0 0.0
        %541 = vmatprep.subr.mxu0 0.0
        %542 = vmatpush1.msra.mxu0 0.0
        %543 = vmatprep.subr.mxu0 0.0
        %544 = vmatpush1.msra.mxu0 0.0
        %545 = vmatprep.subr.mxu0 0.0
        %546 = vmatpush1.msra.mxu0 0.0
        %547 = vmatprep.subr.mxu0 0.0
        %548 = vmatpush1.msra.mxu0 0.0
        %549 = vmatprep.subr.mxu0 0.0
        %550 = vmatpush1.msra.mxu0 0.0
        %551 = vmatprep.subr.mxu0 0.0
        %552 = vmatpush1.msra.mxu0 0.0
        %553 = vmatprep.subr.mxu0 0.0
        %554 = vmatpush1.msra.mxu0 0.0
        %555 = vmatprep.subr.mxu0 0.0
        %556 = vmatpush1.msra.mxu0 0.0
        %557 = vmatprep.subr.mxu0 0.0
        %558 = vmatpush1.msra.mxu0 0.0
        %559 = vmatprep.subr.mxu0 0.0
        %560 = vmatpush1.msra.mxu0 0.0
        %561 = vmatprep.subr.mxu0 0.0
        %562 = vmatpush1.msra.mxu0 0.0
        %563 = vmatprep.subr.mxu0 0.0
        %564 = vmatpush1.msra.mxu0 0.0
        %565 = vmatprep.subr.mxu0 0.0
        %566 = vmatpush1.msra.mxu0 0.0
        %567 = vmatprep.subr.mxu0 0.0
        %568 = vmatpush1.msra.mxu0 0.0
        %569 = vmatprep.subr.mxu0 0.0
        %570 = vmatpush1.msra.mxu0 0.0
        %571 = vmatprep.mubr.f32.mxu0 0.0
        %572 = vmatmul.mubr.f32.gmra.mrb[0].mxu0 %v475
        %v573 = vpop.f32.mrb[0].mxu0
        %v574 = vadd.f32 0.0, %v573
        %v575 = vpop.f32.mrb[0].mxu0
        %576 = vmatprep.mubr.f32.mxu0 0.0
        %577 = vmatmul.mubr.f32.gmra.mrb[0].mxu0 %v476
        %v578 = vpop.f32.mrb[0].mxu0
        %v579 = vadd.f32 0.0, %v578
        %v580 = vpop.f32.mrb[0].mxu0
        %581 = vmatprep.mubr.f32.mxu0 0.0
        %582 = vmatmul.mubr.f32.gmra.mrb[0].mxu0 %v477
        %v583 = vpop.f32.mrb[0].mxu0
        %v584 = vadd.f32 0.0, %v583
        %v585 = vpop.f32.mrb[0].mxu0
        %586 = vmatprep.mubr.f32.mxu0 0.0
        %587 = vmatmul.mubr.f32.gmra.mrb[0].mxu0 %v478
        %v588 = vpop.f32.mrb[0].mxu0
        %v589 = vadd.f32 0.0, %v588
        %v590 = vpop.f32.mrb[0].mxu0
        %591 = vmatprep.mubr.f32.mxu0 0.0
        %592 = vmatmul.mubr.f32.gmra.mrb[0].mxu0 %v479
        %v593 = vpop.f32.mrb[0].mxu0
        %v594 = vadd.f32 0.0, %v593
        %v595 = vpop.f32.mrb[0].mxu0
        %596 = vmatprep.mubr.f32.mxu0 0.0
        %597 = vmatmul.mubr.f32.gmra.mrb[0].mxu0 %v480
        %v598 = vpop.f32.mrb[0].mxu0
        %v599 = vadd.f32 0.0, %v598
        %v600 = vpop.f32.mrb[0].mxu0
        %601 = vmatprep.mubr.f32.mxu0 0.0
        %602 = vmatmul.mubr.f32.gmra.mrb[0].mxu0 %v481
        %v603 = vpop.f32.mrb[0].mxu0
        %v604 = vadd.f32 0.0, %v603
        %v605 = vpop.f32.mrb[0].mxu0
        %606 = vmatprep.mubr.f32.mxu0 0.0
        %607 = vmatmul.mubr.f32.gmra.mrb[0].mxu0 %v482
        %v608 = vpop.f32.mrb[0].mxu0
        %v609 = vadd.f32 0.0, %v608
        %v610 = vpop.f32.mrb[0].mxu0
        %611 = vmatprep.mubr.f32.mxu0 0.0
        %612 = vmatmul.mubr.f32.gmra.mrb[0].mxu0 %v483
        %v613 = vpop.f32.mrb[0].mxu0
        %v614 = vadd.f32 0.0, %v613
        %v615 = vpop.f32.mrb[0].mxu0
        %616 = vmatprep.mubr.f32.mxu0 0.0
        %617 = vmatmul.mubr.f32.gmra.mrb[0].mxu0 %v484
        %v618 = vpop.f32.mrb[0].mxu0
        %v619 = vadd.f32 0.0, %v618
        %v620 = vpop.f32.mrb[0].mxu0
        %621 = vmatprep.mubr.f32.mxu0 0.0
        %622 = vmatmul.mubr.f32.gmra.mrb[0].mxu0 %v485
        %v623 = vpop.f32.mrb[0].mxu0
        %v624 = vadd.f32 0.0, %v623
        %v625 = vpop.f32.mrb[0].mxu0
        %626 = vmatprep.mubr.f32.mxu0 0.0
        %627 = vmatmul.mubr.f32.gmra.mrb[0].mxu0 %v486
        %v628 = vpop.f32.mrb[0].mxu0
        %v629 = vadd.f32 0.0, %v628
        %v630 = vpop.f32.mrb[0].mxu0
        %631 = vmatprep.mubr.f32.mxu0 0.0
        %632 = vmatmul.mubr.f32.gmra.mrb[0].mxu0 %v487
        %v633 = vpop.f32.mrb[0].mxu0
        %v634 = vadd.f32 0.0, %v633
        %v635 = vpop.f32.mrb[0].mxu0
        %636 = vmatprep.mubr.f32.mxu0 0.0
        %637 = vmatmul.mubr.f32.gmra.mrb[0].mxu0 %v488
        %v638 = vpop.f32.mrb[0].mxu0
        %v639 = vadd.f32 0.0, %v638
        %v640 = vpop.f32.mrb[0].mxu0
        %641 = vmatprep.mubr.f32.mxu0 0.0
        %642 = vmatmul.mubr.f32.gmra.mrb[0].mxu0 %v489
        %v643 = vpop.f32.mrb[0].mxu0
        %v644 = vadd.f32 0.0, %v643
        %v645 = vpop.f32.mrb[0].mxu0
        %646 = vmatprep.mubr.f32.mxu0 0.0
        %647 = vmatmul.mubr.f32.gmra.mrb[0].mxu0 %v490
        %v648 = vpop.f32.mrb[0].mxu0
        %v649 = vadd.f32 0.0, %v648
        %v650 = vpop.f32.mrb[0].mxu0
        %651 = vdwg.mxu0
        %v652 = vadd.f32 %v459, %v574
        %v653 = vadd.f32 %v460, %v579
        %v654 = vadd.f32 %v461, %v584
        %v655 = vadd.f32 %v462, %v589
        %v656 = vadd.f32 %v463, %v594
        %v657 = vadd.f32 %v464, %v599
        %v658 = vadd.f32 %v465, %v604
        %v659 = vadd.f32 %v466, %v609
        %v660 = vadd.f32 %v467, %v614
        %v661 = vadd.f32 %v468, %v619
        %v662 = vadd.f32 %v469, %v624
        %v663 = vadd.f32 %v470, %v629
        %v664 = vadd.f32 %v471, %v634
        %v665 = vadd.f32 %v472, %v639
        %v666 = vadd.f32 %v473, %v644
        %v667 = vadd.f32 %v474, %v649
        %668 = vst [vmem:[#allocation2] sm:$0xff] %v652
        %669 = vst [vmem:[#allocation2 + $0x8] sm:$0xff] %v653
        %670 = vst [vmem:[#allocation2 + $0x10] sm:$0xff] %v654
        %671 = vst [vmem:[#allocation2 + $0x18] sm:$0xff] %v655
        %672 = vst [vmem:[#allocation2 + $0x20] sm:$0xff] %v656
        %673 = vst [vmem:[#allocation2 + $0x28] sm:$0xff] %v657
        %674 = vst [vmem:[#allocation2 + $0x30] sm:$0xff] %v658
        %675 = vst [vmem:[#allocation2 + $0x38] sm:$0xff] %v659
        %676 = vst [vmem:[#allocation2 + $0x40] sm:$0xff] %v660
        %677 = vst [vmem:[#allocation2 + $0x48] sm:$0xff] %v661
        %678 = vst [vmem:[#allocation2 + $0x50] sm:$0xff] %v662
        %679 = vst [vmem:[#allocation2 + $0x58] sm:$0xff] %v663
        %680 = vst [vmem:[#allocation2 + $0x60] sm:$0xff] %v664
        %681 = vst [vmem:[#allocation2 + $0x68] sm:$0xff] %v665
        %682 = vst [vmem:[#allocation2 + $0x70] sm:$0xff] %v666
        %683 = vst [vmem:[#allocation2 + $0x78] sm:$0xff] %v667
        %p684 = scmp.eq.s32.totalorder %s33, 1
        // Predicated region
        $region73: #{tpu_custom_call.1} parent=47 // pred_check
          %p685 = pneg %p684
        $region74: #{tpu_custom_call.1} parent=47 // pred_check_branch
          %687 = sbr.rel (%p685) target = $region76
        $region75: #{tpu_custom_call.1} parent=47 // pred_region
          %v688 = vld [vmem:[#allocation2] sm:$0xff]
          %v689 = vld [vmem:[#allocation2 + $0x8] sm:$0xff]
          %v690 = vld [vmem:[#allocation2 + $0x10] sm:$0xff]
          %v691 = vld [vmem:[#allocation2 + $0x18] sm:$0xff]
          %v692 = vld [vmem:[#allocation2 + $0x20] sm:$0xff]
          %v693 = vld [vmem:[#allocation2 + $0x28] sm:$0xff]
          %v694 = vld [vmem:[#allocation2 + $0x30] sm:$0xff]
          %v695 = vld [vmem:[#allocation2 + $0x38] sm:$0xff]
          %v696 = vld [vmem:[#allocation2 + $0x40] sm:$0xff]
          %v697 = vld [vmem:[#allocation2 + $0x48] sm:$0xff]
          %v698 = vld [vmem:[#allocation2 + $0x50] sm:$0xff]
          %v699 = vld [vmem:[#allocation2 + $0x58] sm:$0xff]
          %v700 = vld [vmem:[#allocation2 + $0x60] sm:$0xff]
          %v701 = vld [vmem:[#allocation2 + $0x68] sm:$0xff]
          %v702 = vld [vmem:[#allocation2 + $0x70] sm:$0xff]
          %v703 = vld [vmem:[#allocation2 + $0x78] sm:$0xff]
          %v704 = vld [vmem:[#allocation9] sm:$0xff]
          %v705 = vld [vmem:[#allocation9 + $0x8] sm:$0xff]
          %v706 = vld [vmem:[#allocation9 + $0x10] sm:$0xff]
          %v707 = vld [vmem:[#allocation9 + $0x18] sm:$0xff]
          %v708 = vld [vmem:[#allocation9 + $0x20] sm:$0xff]
          %v709 = vld [vmem:[#allocation9 + $0x28] sm:$0xff]
          %v710 = vld [vmem:[#allocation9 + $0x30] sm:$0xff]
          %v711 = vld [vmem:[#allocation9 + $0x38] sm:$0xff]
          %v712 = vld [vmem:[#allocation9 + $0x40] sm:$0xff]
          %v713 = vld [vmem:[#allocation9 + $0x48] sm:$0xff]
          %v714 = vld [vmem:[#allocation9 + $0x50] sm:$0xff]
          %v715 = vld [vmem:[#allocation9 + $0x58] sm:$0xff]
          %v716 = vld [vmem:[#allocation9 + $0x60] sm:$0xff]
          %v717 = vld [vmem:[#allocation9 + $0x68] sm:$0xff]
          %v718 = vld [vmem:[#allocation9 + $0x70] sm:$0xff]
          %v719 = vld [vmem:[#allocation9 + $0x78] sm:$0xff]
          %v720 = vld [vmem:[%s4] sm:$0x1]
          %v722 = vlaneseq
          %v723 = vshrl.u32 %v722, 7
          %v724 = vsub.s32 0, %v723
          %v725 = vrot.slane %v720, %v724
          %727 = vmatprep.subr.mxu0 0.0
          %728 = vmatpush1.msra.mxu0 %v704
          %729 = vmatprep.subr.mxu0 0.0
          %730 = vmatpush1.msra.mxu0 %v705
          %731 = vmatprep.subr.mxu0 0.0
          %732 = vmatpush1.msra.mxu0 %v706
          %733 = vmatprep.subr.mxu0 0.0
          %734 = vmatpush1.msra.mxu0 %v707
          %735 = vmatprep.subr.mxu0 0.0
          %736 = vmatpush1.msra.mxu0 %v708
          %737 = vmatprep.subr.mxu0 0.0
          %738 = vmatpush1.msra.mxu0 %v709
          %739 = vmatprep.subr.mxu0 0.0
          %740 = vmatpush1.msra.mxu0 %v710
          %741 = vmatprep.subr.mxu0 0.0
          %742 = vmatpush1.msra.mxu0 %v711
          %743 = vmatprep.subr.mxu0 0.0
          %744 = vmatpush1.msra.mxu0 %v712
          %745 = vmatprep.subr.mxu0 0.0
          %746 = vmatpush1.msra.mxu0 %v713
          %747 = vmatprep.subr.mxu0 0.0
          %748 = vmatpush1.msra.mxu0 %v714
          %749 = vmatprep.subr.mxu0 0.0
          %750 = vmatpush1.msra.mxu0 %v715
          %751 = vmatprep.subr.mxu0 0.0
          %752 = vmatpush1.msra.mxu0 %v716
          %753 = vmatprep.subr.mxu0 0.0
          %754 = vmatpush1.msra.mxu0 %v717
          %755 = vmatprep.subr.mxu0 0.0
          %756 = vmatpush1.msra.mxu0 %v718
          %757 = vmatprep.subr.mxu0 0.0
          %758 = vmatpush1.msra.mxu0 %v719
          %759 = vmatprep.subr.mxu0 0.0
          %760 = vmatpush1.msra.mxu0 0.0
          %761 = vmatprep.subr.mxu0 0.0
          %762 = vmatpush1.msra.mxu0 0.0
          %763 = vmatprep.subr.mxu0 0.0
          %764 = vmatpush1.msra.mxu0 0.0
          %765 = vmatprep.subr.mxu0 0.0
          %766 = vmatpush1.msra.mxu0 0.0
          %767 = vmatprep.subr.mxu0 0.0
          %768 = vmatpush1.msra.mxu0 0.0
          %769 = vmatprep.subr.mxu0 0.0
          %770 = vmatpush1.msra.mxu0 0.0
          %771 = vmatprep.subr.mxu0 0.0
          %772 = vmatpush1.msra.mxu0 0.0
          %773 = vmatprep.subr.mxu0 0.0
          %774 = vmatpush1.msra.mxu0 0.0
          %775 = vmatprep.subr.mxu0 0.0
          %776 = vmatpush1.msra.mxu0 0.0
          %777 = vmatprep.subr.mxu0 0.0
          %778 = vmatpush1.msra.mxu0 0.0
          %779 = vmatprep.subr.mxu0 0.0
          %780 = vmatpush1.msra.mxu0 0.0
          %781 = vmatprep.subr.mxu0 0.0
          %782 = vmatpush1.msra.mxu0 0.0
          %783 = vmatprep.subr.mxu0 0.0
          %784 = vmatpush1.msra.mxu0 0.0
          %785 = vmatprep.subr.mxu0 0.0
          %786 = vmatpush1.msra.mxu0 0.0
          %787 = vmatprep.subr.mxu0 0.0
          %788 = vmatpush1.msra.mxu0 0.0
          %789 = vmatprep.subr.mxu0 0.0
          %790 = vmatpush1.msra.mxu0 0.0
          %791 = vmatprep.mubr.f32.mxu0 0.0
          %792 = vmatmul.mubr.f32.gmra.mrb[0].mxu0 %v688
          %v793 = vpop.f32.mrb[0].mxu0
          %v794 = vadd.f32 %v725, %v793
          %v795 = vpop.f32.mrb[0].mxu0
          %796 = vmatprep.mubr.f32.mxu0 0.0
          %797 = vmatmul.mubr.f32.gmra.mrb[0].mxu0 %v689
          %v798 = vpop.f32.mrb[0].mxu0
          %v799 = vadd.f32 %v725, %v798
          %v800 = vpop.f32.mrb[0].mxu0
          %801 = vmatprep.mubr.f32.mxu0 0.0
          %802 = vmatmul.mubr.f32.gmra.mrb[0].mxu0 %v690
          %v803 = vpop.f32.mrb[0].mxu0
          %v804 = vadd.f32 %v725, %v803
          %v805 = vpop.f32.mrb[0].mxu0
          %806 = vmatprep.mubr.f32.mxu0 0.0
          %807 = vmatmul.mubr.f32.gmra.mrb[0].mxu0 %v691
          %v808 = vpop.f32.mrb[0].mxu0
          %v809 = vadd.f32 %v725, %v808
          %v810 = vpop.f32.mrb[0].mxu0
          %811 = vmatprep.mubr.f32.mxu0 0.0
          %812 = vmatmul.mubr.f32.gmra.mrb[0].mxu0 %v692
          %v813 = vpop.f32.mrb[0].mxu0
          %v814 = vadd.f32 %v725, %v813
          %v815 = vpop.f32.mrb[0].mxu0
          %816 = vmatprep.mubr.f32.mxu0 0.0
          %817 = vmatmul.mubr.f32.gmra.mrb[0].mxu0 %v693
          %v818 = vpop.f32.mrb[0].mxu0
          %v819 = vadd.f32 %v725, %v818
          %v820 = vpop.f32.mrb[0].mxu0
          %821 = vmatprep.mubr.f32.mxu0 0.0
          %822 = vmatmul.mubr.f32.gmra.mrb[0].mxu0 %v694
          %v823 = vpop.f32.mrb[0].mxu0
          %v824 = vadd.f32 %v725, %v823
          %v825 = vpop.f32.mrb[0].mxu0
          %826 = vmatprep.mubr.f32.mxu0 0.0
          %827 = vmatmul.mubr.f32.gmra.mrb[0].mxu0 %v695
          %v828 = vpop.f32.mrb[0].mxu0
          %v829 = vadd.f32 %v725, %v828
          %v830 = vpop.f32.mrb[0].mxu0
          %831 = vmatprep.mubr.f32.mxu0 0.0
          %832 = vmatmul.mubr.f32.gmra.mrb[0].mxu0 %v696
          %v833 = vpop.f32.mrb[0].mxu0
          %v834 = vadd.f32 %v725, %v833
          %v835 = vpop.f32.mrb[0].mxu0
          %836 = vmatprep.mubr.f32.mxu0 0.0
          %837 = vmatmul.mubr.f32.gmra.mrb[0].mxu0 %v697
          %v838 = vpop.f32.mrb[0].mxu0
          %v839 = vadd.f32 %v725, %v838
          %v840 = vpop.f32.mrb[0].mxu0
          %841 = vmatprep.mubr.f32.mxu0 0.0
          %842 = vmatmul.mubr.f32.gmra.mrb[0].mxu0 %v698
          %v843 = vpop.f32.mrb[0].mxu0
          %v844 = vadd.f32 %v725, %v843
          %v845 = vpop.f32.mrb[0].mxu0
          %846 = vmatprep.mubr.f32.mxu0 0.0
          %847 = vmatmul.mubr.f32.gmra.mrb[0].mxu0 %v699
          %v848 = vpop.f32.mrb[0].mxu0
          %v849 = vadd.f32 %v725, %v848
          %v850 = vpop.f32.mrb[0].mxu0
          %851 = vmatprep.mubr.f32.mxu0 0.0
          %852 = vmatmul.mubr.f32.gmra.mrb[0].mxu0 %v700
          %v853 = vpop.f32.mrb[0].mxu0
          %v854 = vadd.f32 %v725, %v853
          %v855 = vpop.f32.mrb[0].mxu0
          %856 = vmatprep.mubr.f32.mxu0 0.0
          %857 = vmatmul.mubr.f32.gmra.mrb[0].mxu0 %v701
          %v858 = vpop.f32.mrb[0].mxu0
          %v859 = vadd.f32 %v725, %v858
          %v860 = vpop.f32.mrb[0].mxu0
          %861 = vmatprep.mubr.f32.mxu0 0.0
          %862 = vmatmul.mubr.f32.gmra.mrb[0].mxu0 %v702
          %v863 = vpop.f32.mrb[0].mxu0
          %v864 = vadd.f32 %v725, %v863
          %v865 = vpop.f32.mrb[0].mxu0
          %866 = vmatprep.mubr.f32.mxu0 0.0
          %867 = vmatmul.mubr.f32.gmra.mrb[0].mxu0 %v703
          %v868 = vpop.f32.mrb[0].mxu0
          %v869 = vadd.f32 %v725, %v868
          %v870 = vpop.f32.mrb[0].mxu0
          %871 = vdwg.mxu0
          %v872 = vmax.f32 %v794, 0.0
          %v873 = vmax.f32 %v799, 0.0
          %v874 = vmax.f32 %v804, 0.0
          %v875 = vmax.f32 %v809, 0.0
          %v876 = vmax.f32 %v814, 0.0
          %v877 = vmax.f32 %v819, 0.0
          %v878 = vmax.f32 %v824, 0.0
          %v879 = vmax.f32 %v829, 0.0
          %v880 = vmax.f32 %v834, 0.0
          %v881 = vmax.f32 %v839, 0.0
          %v882 = vmax.f32 %v844, 0.0
          %v883 = vmax.f32 %v849, 0.0
          %v884 = vmax.f32 %v854, 0.0
          %v885 = vmax.f32 %v859, 0.0
          %v886 = vmax.f32 %v864, 0.0
          %v887 = vmax.f32 %v869, 0.0
          %v888 = vld [vmem:[#allocation11] sm:$0xff]
          %v889 = vld [vmem:[#allocation11 + $0x8] sm:$0xff]
          %v890 = vld [vmem:[#allocation11 + $0x10] sm:$0xff]
          %v891 = vld [vmem:[#allocation11 + $0x18] sm:$0xff]
          %v892 = vld [vmem:[#allocation11 + $0x20] sm:$0xff]
          %v893 = vld [vmem:[#allocation11 + $0x28] sm:$0xff]
          %v894 = vld [vmem:[#allocation11 + $0x30] sm:$0xff]
          %v895 = vld [vmem:[#allocation11 + $0x38] sm:$0xff]
          %v896 = vld [vmem:[#allocation11 + $0x40] sm:$0xff]
          %v897 = vld [vmem:[#allocation11 + $0x48] sm:$0xff]
          %v898 = vld [vmem:[#allocation11 + $0x50] sm:$0xff]
          %v899 = vld [vmem:[#allocation11 + $0x58] sm:$0xff]
          %v900 = vld [vmem:[#allocation11 + $0x60] sm:$0xff]
          %v901 = vld [vmem:[#allocation11 + $0x68] sm:$0xff]
          %v902 = vld [vmem:[#allocation11 + $0x70] sm:$0xff]
          %v903 = vld [vmem:[#allocation11 + $0x78] sm:$0xff]
          %v904 = vld [vmem:[%s6] sm:$0x1]
          %v906 = vlaneseq
          %v907 = vshrl.u32 %v906, 7
          %v908 = vsub.s32 0, %v907
          %v909 = vrot.slane %v904, %v908
          %911 = vmatprep.subr.mxu0 0.0
          %912 = vmatpush1.msra.mxu0 %v888
          %913 = vmatprep.subr.mxu0 0.0
          %914 = vmatpush1.msra.mxu0 %v889
          %915 = vmatprep.subr.mxu0 0.0
          %916 = vmatpush1.msra.mxu0 %v890
          %917 = vmatprep.subr.mxu0 0.0
          %918 = vmatpush1.msra.mxu0 %v891
          %919 = vmatprep.subr.mxu0 0.0
          %920 = vmatpush1.msra.mxu0 %v892
          %921 = vmatprep.subr.mxu0 0.0
          %922 = vmatpush1.msra.mxu0 %v893
          %923 = vmatprep.subr.mxu0 0.0
          %924 = vmatpush1.msra.mxu0 %v894
          %925 = vmatprep.subr.mxu0 0.0
          %926 = vmatpush1.msra.mxu0 %v895
          %927 = vmatprep.subr.mxu0 0.0
          %928 = vmatpush1.msra.mxu0 %v896
          %929 = vmatprep.subr.mxu0 0.0
          %930 = vmatpush1.msra.mxu0 %v897
          %931 = vmatprep.subr.mxu0 0.0
          %932 = vmatpush1.msra.mxu0 %v898
          %933 = vmatprep.subr.mxu0 0.0
          %934 = vmatpush1.msra.mxu0 %v899
          %935 = vmatprep.subr.mxu0 0.0
          %936 = vmatpush1.msra.mxu0 %v900
          %937 = vmatprep.subr.mxu0 0.0
          %938 = vmatpush1.msra.mxu0 %v901
          %939 = vmatprep.subr.mxu0 0.0
          %940 = vmatpush1.msra.mxu0 %v902
          %941 = vmatprep.subr.mxu0 0.0
          %942 = vmatpush1.msra.mxu0 %v903
          %943 = vmatprep.subr.mxu0 0.0
          %944 = vmatpush1.msra.mxu0 0.0
          %945 = vmatprep.subr.mxu0 0.0
          %946 = vmatpush1.msra.mxu0 0.0
          %947 = vmatprep.subr.mxu0 0.0
          %948 = vmatpush1.msra.mxu0 0.0
          %949 = vmatprep.subr.mxu0 0.0
          %950 = vmatpush1.msra.mxu0 0.0
          %951 = vmatprep.subr.mxu0 0.0
          %952 = vmatpush1.msra.mxu0 0.0
          %953 = vmatprep.subr.mxu0 0.0
          %954 = vmatpush1.msra.mxu0 0.0
          %955 = vmatprep.subr.mxu0 0.0
          %956 = vmatpush1.msra.mxu0 0.0
          %957 = vmatprep.subr.mxu0 0.0
          %958 = vmatpush1.msra.mxu0 0.0
          %959 = vmatprep.subr.mxu0 0.0
          %960 = vmatpush1.msra.mxu0 0.0
          %961 = vmatprep.subr.mxu0 0.0
          %962 = vmatpush1.msra.mxu0 0.0
          %963 = vmatprep.subr.mxu0 0.0
          %964 = vmatpush1.msra.mxu0 0.0
          %965 = vmatprep.subr.mxu0 0.0
          %966 = vmatpush1.msra.mxu0 0.0
          %967 = vmatprep.subr.mxu0 0.0
          %968 = vmatpush1.msra.mxu0 0.0
          %969 = vmatprep.subr.mxu0 0.0
          %970 = vmatpush1.msra.mxu0 0.0
          %971 = vmatprep.subr.mxu0 0.0
          %972 = vmatpush1.msra.mxu0 0.0
          %973 = vmatprep.subr.mxu0 0.0
          %974 = vmatpush1.msra.mxu0 0.0
          %975 = vmatprep.mubr.f32.mxu0 0.0
          %976 = vmatmul.mubr.f32.gmra.mrb[0].mxu0 %v872
          %v977 = vpop.f32.mrb[0].mxu0
          %v978 = vadd.f32 %v909, %v977
          %v979 = vpop.f32.mrb[0].mxu0
          %980 = vmatprep.mubr.f32.mxu0 0.0
          %981 = vmatmul.mubr.f32.gmra.mrb[0].mxu0 %v873
          %v982 = vpop.f32.mrb[0].mxu0
          %v983 = vadd.f32 %v909, %v982
          %v984 = vpop.f32.mrb[0].mxu0
          %985 = vmatprep.mubr.f32.mxu0 0.0
          %986 = vmatmul.mubr.f32.gmra.mrb[0].mxu0 %v874
          %v987 = vpop.f32.mrb[0].mxu0
          %v988 = vadd.f32 %v909, %v987
          %v989 = vpop.f32.mrb[0].mxu0
          %990 = vmatprep.mubr.f32.mxu0 0.0
          %991 = vmatmul.mubr.f32.gmra.mrb[0].mxu0 %v875
          %v992 = vpop.f32.mrb[0].mxu0
          %v993 = vadd.f32 %v909, %v992
          %v994 = vpop.f32.mrb[0].mxu0
          %995 = vmatprep.mubr.f32.mxu0 0.0
          %996 = vmatmul.mubr.f32.gmra.mrb[0].mxu0 %v876
          %v997 = vpop.f32.mrb[0].mxu0
          %v998 = vadd.f32 %v909, %v997
          %v999 = vpop.f32.mrb[0].mxu0
          %1000 = vmatprep.mubr.f32.mxu0 0.0
          %1001 = vmatmul.mubr.f32.gmra.mrb[0].mxu0 %v877
          %v1002 = vpop.f32.mrb[0].mxu0
          %v1003 = vadd.f32 %v909, %v1002
          %v1004 = vpop.f32.mrb[0].mxu0
          %1005 = vmatprep.mubr.f32.mxu0 0.0
          %1006 = vmatmul.mubr.f32.gmra.mrb[0].mxu0 %v878
          %v1007 = vpop.f32.mrb[0].mxu0
          %v1008 = vadd.f32 %v909, %v1007
          %v1009 = vpop.f32.mrb[0].mxu0
          %1010 = vmatprep.mubr.f32.mxu0 0.0
          %1011 = vmatmul.mubr.f32.gmra.mrb[0].mxu0 %v879
          %v1012 = vpop.f32.mrb[0].mxu0
          %v1013 = vadd.f32 %v909, %v1012
          %v1014 = vpop.f32.mrb[0].mxu0
          %1015 = vmatprep.mubr.f32.mxu0 0.0
          %1016 = vmatmul.mubr.f32.gmra.mrb[0].mxu0 %v880
          %v1017 = vpop.f32.mrb[0].mxu0
          %v1018 = vadd.f32 %v909, %v1017
          %v1019 = vpop.f32.mrb[0].mxu0
          %1020 = vmatprep.mubr.f32.mxu0 0.0
          %1021 = vmatmul.mubr.f32.gmra.mrb[0].mxu0 %v881
          %v1022 = vpop.f32.mrb[0].mxu0
          %v1023 = vadd.f32 %v909, %v1022
          %v1024 = vpop.f32.mrb[0].mxu0
          %1025 = vmatprep.mubr.f32.mxu0 0.0
          %1026 = vmatmul.mubr.f32.gmra.mrb[0].mxu0 %v882
          %v1027 = vpop.f32.mrb[0].mxu0
          %v1028 = vadd.f32 %v909, %v1027
          %v1029 = vpop.f32.mrb[0].mxu0
          %1030 = vmatprep.mubr.f32.mxu0 0.0
          %1031 = vmatmul.mubr.f32.gmra.mrb[0].mxu0 %v883
          %v1032 = vpop.f32.mrb[0].mxu0
          %v1033 = vadd.f32 %v909, %v1032
          %v1034 = vpop.f32.mrb[0].mxu0
          %1035 = vmatprep.mubr.f32.mxu0 0.0
          %1036 = vmatmul.mubr.f32.gmra.mrb[0].mxu0 %v884
          %v1037 = vpop.f32.mrb[0].mxu0
          %v1038 = vadd.f32 %v909, %v1037
          %v1039 = vpop.f32.mrb[0].mxu0
          %1040 = vmatprep.mubr.f32.mxu0 0.0
          %1041 = vmatmul.mubr.f32.gmra.mrb[0].mxu0 %v885
          %v1042 = vpop.f32.mrb[0].mxu0
          %v1043 = vadd.f32 %v909, %v1042
          %v1044 = vpop.f32.mrb[0].mxu0
          %1045 = vmatprep.mubr.f32.mxu0 0.0
          %1046 = vmatmul.mubr.f32.gmra.mrb[0].mxu0 %v886
          %v1047 = vpop.f32.mrb[0].mxu0
          %v1048 = vadd.f32 %v909, %v1047
          %v1049 = vpop.f32.mrb[0].mxu0
          %1050 = vmatprep.mubr.f32.mxu0 0.0
          %1051 = vmatmul.mubr.f32.gmra.mrb[0].mxu0 %v887
          %v1052 = vpop.f32.mrb[0].mxu0
          %v1053 = vadd.f32 %v909, %v1052
          %v1054 = vpop.f32.mrb[0].mxu0
          %1055 = vdwg.mxu0
          %v1056 = vmax.f32 %v978, 0.0
          %v1057 = vmax.f32 %v983, 0.0
          %v1058 = vmax.f32 %v988, 0.0
          %v1059 = vmax.f32 %v993, 0.0
          %v1060 = vmax.f32 %v998, 0.0
          %v1061 = vmax.f32 %v1003, 0.0
          %v1062 = vmax.f32 %v1008, 0.0
          %v1063 = vmax.f32 %v1013, 0.0
          %v1064 = vmax.f32 %v1018, 0.0
          %v1065 = vmax.f32 %v1023, 0.0
          %v1066 = vmax.f32 %v1028, 0.0
          %v1067 = vmax.f32 %v1033, 0.0
          %v1068 = vmax.f32 %v1038, 0.0
          %v1069 = vmax.f32 %v1043, 0.0
          %v1070 = vmax.f32 %v1048, 0.0
          %v1071 = vmax.f32 %v1053, 0.0
          %1072 = vst [vmem:[%s418] sm:$0xff] %v1056
          %1073 = vst [vmem:[%s418 + $0x8] sm:$0xff] %v1057
          %1074 = vst [vmem:[%s418 + $0x10] sm:$0xff] %v1058
          %1075 = vst [vmem:[%s418 + $0x18] sm:$0xff] %v1059
          %1076 = vst [vmem:[%s418 + $0x20] sm:$0xff] %v1060
          %1077 = vst [vmem:[%s418 + $0x28] sm:$0xff] %v1061
          %1078 = vst [vmem:[%s418 + $0x30] sm:$0xff] %v1062
          %1079 = vst [vmem:[%s418 + $0x38] sm:$0xff] %v1063
          %1080 = vst [vmem:[%s418 + $0x40] sm:$0xff] %v1064
          %1081 = vst [vmem:[%s418 + $0x48] sm:$0xff] %v1065
          %1082 = vst [vmem:[%s418 + $0x50] sm:$0xff] %v1066
          %1083 = vst [vmem:[%s418 + $0x58] sm:$0xff] %v1067
          %1084 = vst [vmem:[%s418 + $0x60] sm:$0xff] %v1068
          %1085 = vst [vmem:[%s418 + $0x68] sm:$0xff] %v1069
          %1086 = vst [vmem:[%s418 + $0x70] sm:$0xff] %v1070
          %1087 = vst [vmem:[%s418 + $0x78] sm:$0xff] %v1071
        $region76: #{tpu_custom_call.1} parent=47 // pred_fallthru
          _
        %s1088 = sand.u32 %s212, 1
        %s1089 = scalar_lea.sflag [#allocation5], %s1088
        %s1090 = sand.u32 %s212, 1
        %s1091 = smul.addr %s1090, 128
        %s1092 = scalar_lea.vmem [#allocation12], %s1091
        // Predicated region
        $region77: #{tpu_custom_call.1} parent=47 // pred_check
          %p1093 = pneg %p222
        $region78: #{tpu_custom_call.1} parent=47 // pred_check_branch
          %1095 = sbr.rel (%p1093) target = $region80
        $region79: #{tpu_custom_call.1} parent=47 // pred_region
          %s1096 = smul.u32 16, %s32
          %s1098 = ssub.s32 2048, 2048
          %1099 = vsyncadd %s1089, %s1098
          %s1100 = smul.addr %s1096, 128
          %s1101 = scalar_lea.hbm %s7, %s1100
          %s1102 = sshll.u32 %s1092, 4
          %s1103 = int_to_ptr.vmem [resolvable:$true] %s1102
          %1108 = dma.vmem_to_hbm [thread:$0]  %s1103, 2048, %s1101, %s1089, 128, 128, 8
        $region80: #{tpu_custom_call.1} parent=47 // pred_fallthru
          _
      $region48: #{tpu_custom_call.1} parent=5 // pred_fallthru
        _
      %p1109 = scmp.le.s32.totalorder 2, %s23
      // Predicated region
      $region81: #{tpu_custom_call.1} parent=5 // pred_check
        %p1110 = pneg %p1109
      $region82: #{tpu_custom_call.1} parent=5 // pred_check_branch
        %1112 = sbr.rel (%p1110) target = $region84
      $region83: #{tpu_custom_call.1} parent=5 // pred_region
        %s1113 = ssub.s32 %s23, 2
        // Predicated region
        $region85: #{tpu_custom_call.1} parent=83 // pred_check
          %p1114 = pneg %p228
        $region86: #{tpu_custom_call.1} parent=83 // pred_check_branch
          %1116 = sbr.rel (%p1114) target = $region88
        $region87: #{tpu_custom_call.1} parent=83 // pred_region
          %s1117 = sand.u32 %s213, 1
          %s1118 = scalar_lea.sflag [#allocation5], %s1117
          %s1119 = sand.u32 %s213, 1
          %s1120 = smul.addr %s1119, 128
          %s1121 = scalar_lea.vmem [#allocation12], %s1120
          %1122 = dma.done %s1118, 2048
        $region88: #{tpu_custom_call.1} parent=83 // pred_fallthru
          _
      $region84: #{tpu_custom_call.1} parent=5 // pred_fallthru
        _
    $region6: #{tpu_custom_call.1} parent=1 // loop_footer
      %s27 = sadd.s32 1, %s23
    $region7: #{tpu_custom_call.1} parent=1 // loop_footer_branch
      %22 = sbr.rel target = $region3
    $region8: #{tpu_custom_call.1} parent=1 // loop_exit
      _
    %1123 = vsyncpa [#allocation4], 1
    %s1124 = scalar_lea.sflag [#allocation4], 1
    %1125 = vsyncpa %s1124, 1
    %1126 = vsyncpa [#allocation7], 1
    %s1127 = scalar_lea.sflag [#allocation7], 1
    %1128 = vsyncpa %s1127, 1
    %1129 = vsyncpa [#allocation10], 1
    %1130 = vsyncpa [#allocation5], 1
    %s1131 = scalar_lea.sflag [#allocation5], 1
    %1132 = vsyncpa %s1131, 1

</llo_original>
